<compile_context>
chip_gen: v5e
topology: v5e:2x2
jax: 0.10.0
libtpu: 0.0.40
codegen_flags: <defaults>
</compile_context>

<pallas_src>
import jax
import jax.numpy as jnp
from jax.experimental import pallas as pl
from jax.experimental.pallas import tpu as pltpu


def _softplus_kernel(x_ref, o_ref):
    # Numerically stable log(1 + exp(x)):
    #   x >  T : exp(x) would overflow; log1p(exp(x)) == x to fp precision
    #   x <= T : log1p(exp(x))  (log1p avoids the log(1+eps) precision loss)
    # Compute in f32 (safe on v5e which has no bf16 VPU/EUP path), cast on store.
    x = x_ref[...].astype(jnp.float32)
    t = jnp.float32(20.0)
    sp = jnp.where(x > t, x, jnp.log1p(jnp.exp(jnp.minimum(x, t))))
    o_ref[...] = sp.astype(o_ref.dtype)


def _choose_lane(n: int) -> int | None:
    # Widest lane count (multiple of 128) that divides the element count.
    for lane in (2048, 1024, 512, 256, 128):
        if n % lane == 0:
            return lane
    return None


def mish_forward(x: jax.Array, *, target_block_bytes: int = 2 * 1024 * 1024) -> jax.Array:
    """log(1 + exp(x)) elementwise via a Pallas TPU kernel (stable softplus)."""
    orig_shape = x.shape
    orig_dtype = x.dtype
    n = x.size
    itemsize = jnp.dtype(orig_dtype).itemsize

    lane = _choose_lane(n)
    n_pad = 0
    x_flat = jnp.reshape(x, (-1,))
    if lane is None:
        # Rare fallback: element count not a multiple of 128 — pad by < 128
        # elements.  (XLA still materializes a copy here; unavoidable without a
        # masked-tail kernel.)
        lane = 128
        n_pad = (-n) % lane
        x_flat = jnp.concatenate([x_flat, jnp.zeros((n_pad,), dtype=orig_dtype)])

    rows = x_flat.size // lane
    x2d = jnp.reshape(x_flat, (rows, lane))  # free reshape (contiguous)

    # ~target_block_bytes per block; full-height block if the array is small.
    tile_rows = max(8, target_block_bytes // (lane * itemsize))
    if tile_rows >= rows:
        tile_rows = rows                     # full extent -> always legal
    else:
        tile_rows = (tile_rows // 8) * 8     # second-to-last dim multiple of 8

    grid = (pl.cdiv(rows, tile_rows),)

    out2d = pl.pallas_call(
        _softplus_kernel,
        out_shape=jax.ShapeDtypeStruct((rows, lane), orig_dtype),
        grid=grid,
        in_specs=[pl.BlockSpec((tile_rows, lane), lambda i: (i, 0))],
        out_specs=pl.BlockSpec((tile_rows, lane), lambda i: (i, 0)),
        compiler_params=pltpu.CompilerParams(
            dimension_semantics=("parallel",),
        ),
    )(x2d)

    out_flat = jnp.reshape(out2d, (-1,))
    if n_pad:
        out_flat = out_flat[:n]
    return jnp.reshape(out_flat, orig_shape)


if __name__ == "__main__":
    key = jax.random.PRNGKey(0)
    # Small NCHW-like input consistent with the module's forward.
    x = jax.random.normal(key, (2, 4, 16, 16), dtype=jnp.float32)

    out = jax.block_until_ready(mish_forward(x))

    # Reference check (plain JAX), same formula as the PyTorch module.
    ref = jnp.log(1.0 + jnp.exp(x))
    assert out.shape == x.shape and out.dtype == x.dtype
    assert jnp.allclose(out, ref, atol=1e-5, rtol=1e-5)

    print("KERNEL_OK")
</pallas_src>

<mosaic_0001>
module attributes {stable_mosaic.version = 11 : i64} {
  func.func @_softplus_kernel(%arg0: i32, %arg1: memref<1x2048xf32, #tpu.memory_space<vmem>>, %arg2: memref<1x2048xf32, #tpu.memory_space<vmem>>) attributes {dimension_semantics = [#tpu.dimension_semantics<parallel>], iteration_bounds = array<i64: 1>, scalar_prefetch = 0 : i64, scratch_operands = 0 : i64, tpu.core_type = #tpu.core_type<tc>, window_params = [{transform_indices = @transform_0, window_bounds = array<i64: 1, 2048>}, {transform_indices = @transform_1, window_bounds = array<i64: 1, 2048>}]} {
    %c0 = arith.constant 0 : index
    %c0_0 = arith.constant 0 : index
    %0 = vector.load %arg1[%c0, %c0_0] : memref<1x2048xf32, #tpu.memory_space<vmem>>, vector<1x2048xf32>
    %cst = arith.constant 2.000000e+01 : f32
    %1 = vector.broadcast %cst : f32 to vector<1x2048xf32>
    %2 = arith.cmpf ogt, %0, %1 : vector<1x2048xf32>
    %cst_1 = arith.constant 2.000000e+01 : f32
    %3 = vector.broadcast %cst_1 : f32 to vector<1x2048xf32>
    %4 = arith.minimumf %0, %3 : vector<1x2048xf32>
    %5 = math.exp %4 : vector<1x2048xf32>
    %6 = math.log1p %5 : vector<1x2048xf32>
    %7 = arith.select %2, %0, %6 : vector<1x2048xi1>, vector<1x2048xf32>
    %c0_2 = arith.constant 0 : index
    %c0_3 = arith.constant 0 : index
    %8 = vector.load %arg2[%c0_2, %c0_3] : memref<1x2048xf32, #tpu.memory_space<vmem>>, vector<1x2048xf32>
    tpu.vector_store %arg2[%c0_2, %c0_3], %7 {strides = array<i32>} : memref<1x2048xf32, #tpu.memory_space<vmem>>, vector<1x2048xf32>,
    return
  }
  func.func @transform_0(%arg0: i32) -> (i32, i32) {
    %c0_i32 = arith.constant 0 : i32
    %c0_i32_0 = arith.constant 0 : i32
    return %arg0, %c0_i32 : i32, i32
  }
  func.func @transform_1(%arg0: i32) -> (i32, i32) {
    %c0_i32 = arith.constant 0 : i32
    %c0_i32_0 = arith.constant 0 : i32
    return %arg0, %c0_i32 : i32, i32
  }
}

</mosaic_0001>

<llo_original>
// kernel: tpu_custom_call.1
$region0: #{tpu_custom_call.1}
  #allocation0 [shape = 'u32[]', space=smem, size = 0x4, offset = 0x4, fixed_abs, tag = 'smem constant byte address 0x4 - core index']
  #allocation1 [shape = 'u32[72,128]{1,0:T(1,128)}', space=vmem, size = 0x9000, scoped, tag = 'internal scratch']
  %s0 = inlined_call_operand.hbm [shape: f32[1,2048], index: 0, kind: input, shape index: {}]
  %s1 = inlined_call_operand.hbm [shape: f32[1,2048], index: 1, kind: output, shape index: {}]
  %s2 = sld [smem:[#allocation0]]
  $region18: #{tpu_custom_call.1} parent=0
    _
  %s4 = ssub.s32 1, %s2
  %s5 = scalar_select 0, %s4, %s2
  $region1: #{tpu_custom_call.1} parent=0
    #allocation2 [shape = 'u8[8192]{0}', space=vmem, size = 0x2000, scoped, tag = 'input window, operand 0, single buffered']
    #allocation3 [shape = 's32[1]{0}', space=sflag, size = 0x4, scoped, tag = 'scoped memory for tpu_custom_call.1']
    #allocation4 [shape = 's32[1]{0}', space=sflag, size = 0x4, scoped, tag = 'scoped memory for tpu_custom_call.1']
    #allocation5 [shape = 'u8[8192]{0}', space=vmem, size = 0x2000, scoped, tag = 'output window, operand 0, single buffered']
    %6 = vsyncpa [#allocation3], 0
    %7 = vsyncpa [#allocation4], 0
    // Predicated region
    $region2: #{tpu_custom_call.1} parent=1 // pred_check
      _
    $region3: #{tpu_custom_call.1} parent=1 // pred_check_branch
      %9 = sbr.rel (0) target = $region5
    $region4: #{tpu_custom_call.1} parent=1 // pred_region
      %11 = vsyncadd [#allocation3], 0
      %s13 = sshll.u32 %s0, 4
      %s14 = int_to_ptr.hbm [resolvable:$true] %s13
      %s15 = sshll.u32 [#allocation2], 4
      %s16 = int_to_ptr.vmem [resolvable:$true] %s15
      %18 = dma.hbm_to_vmem [thread:$0]  %s14, 256, %s16, [#allocation3]
    $region5: #{tpu_custom_call.1} parent=1 // pred_fallthru
      _
    // Predicated region
    $region6: #{tpu_custom_call.1} parent=1 // pred_check
      _
    $region7: #{tpu_custom_call.1} parent=1 // pred_check_branch
      %20 = sbr.rel (0) target = $region9
    $region8: #{tpu_custom_call.1} parent=1 // pred_region
      %22 = dma.done [#allocation3], 256
    $region9: #{tpu_custom_call.1} parent=1 // pred_fallthru
      _
    %v23 = vld [vmem:[#allocation2] sm:$0xff]
    %v24 = vld [vmem:[#allocation2 + $0x8] sm:$0xff]
    %vm25 = vcmp.gt.f32.partialorder %v23, 20.0
    %vm26 = vcmp.gt.f32.partialorder %v24, 20.0
    %v27 = vmin.f32 %v23, 20.0
    %v28 = vmin.f32 %v24, 20.0
    %v29 = vmul.f32 %v27, 1.442695
    %v30 = vpow.pop %v29
    %v31 = vmul.f32 %v28, 1.442695
    %v32 = vpow.pop %v31
    %v33 = vadd.f32 %v30, 1.0
    %v34 = vlog2.pop %v33
    %v35 = vmul.f32 %v34, 0.6931472
    %v36 = vmul.f32 -0.5, %v30
    %v37 = vadd.f32 %v36, 1.0
    %v38 = vmul.f32 %v37, %v30
    %v39 = vand.u32 2147483647, %v30
    %vm40 = vcmp.lt.f32.partialorder %v39, 0.0004427343
    %v41 = vsel %vm40, %v38, %v35
    %v42 = vadd.f32 %v32, 1.0
    %v43 = vlog2.pop %v42
    %v44 = vmul.f32 %v43, 0.6931472
    %v45 = vmul.f32 -0.5, %v32
    %v46 = vadd.f32 %v45, 1.0
    %v47 = vmul.f32 %v46, %v32
    %v48 = vand.u32 2147483647, %v32
    %vm49 = vcmp.lt.f32.partialorder %v48, 0.0004427343
    %v50 = vsel %vm49, %v47, %v44
    %v51 = vsel %vm25, %v23, %v41
    %v52 = vsel %vm26, %v24, %v50
    %53 = vst [vmem:[#allocation5] sm:$0xff] %v51
    %54 = vst [vmem:[#allocation5 + $0x8] sm:$0xff] %v52
    // Predicated region
    $region10: #{tpu_custom_call.1} parent=1 // pred_check
      _
    $region11: #{tpu_custom_call.1} parent=1 // pred_check_branch
      %56 = sbr.rel (0) target = $region13
    $region12: #{tpu_custom_call.1} parent=1 // pred_region
      %58 = vsyncadd [#allocation4], 0
      %s60 = sshll.u32 [#allocation5], 4
      %s61 = int_to_ptr.vmem [resolvable:$true] %s60
      %s62 = sshll.u32 %s1, 4
      %s63 = int_to_ptr.hbm [resolvable:$true] %s62
      %65 = dma.vmem_to_hbm [thread:$0]  %s61, 256, %s63, [#allocation4]
    $region13: #{tpu_custom_call.1} parent=1 // pred_fallthru
      _
    // Predicated region
    $region14: #{tpu_custom_call.1} parent=1 // pred_check
      _
    $region15: #{tpu_custom_call.1} parent=1 // pred_check_branch
      %67 = sbr.rel (0) target = $region17
    $region16: #{tpu_custom_call.1} parent=1 // pred_region
      %69 = dma.done [#allocation4], 256
    $region17: #{tpu_custom_call.1} parent=1 // pred_fallthru
      _
    %70 = vsyncpa [#allocation3], 1
    %71 = vsyncpa [#allocation4], 1

</llo_original>
